<compile_context>
chip_gen: v7x
topology: tpu7x:2x2x1
jax: 0.10.0
libtpu: 0.0.40
codegen_flags: <defaults>
</compile_context>

<pallas_src>
import functools

import jax
import jax.numpy as jnp
from jax import lax
from jax.experimental import pallas as pl
from jax.experimental.pallas import tpu as pltpu


def _binarize(x):
    """VAD binarization in the wire dtype (no upcast).

    Floats: x > 0.5.  Integer labels: x > 0.  For targets in {0, 1, 2} this is
    exactly the reference mapping (targets==2 -> 1) followed by equality with
    the binarized preds.
    """
    if jnp.issubdtype(x.dtype, jnp.integer):
        return x > 0
    return x > 0.5


def _make_kernel(B, T, blk_b, blk_t):
    need_row_mask = (B % blk_b) != 0   # static Python bools
    need_col_mask = (T % blk_t) != 0

    def kernel(p_ref, t_ref, acc_ref):
        ib = pl.program_id(0)
        jt = pl.program_id(1)

        @pl.when((ib == 0) & (jt == 0))
        def _init():
            acc_ref[...] = jnp.zeros_like(acc_ref)

        # Single compare per input in its own dtype; widen only the bool.
        match = _binarize(p_ref[...]) == _binarize(t_ref[...])

        if not (need_row_mask or need_col_mask):
            acc_ref[...] += match.astype(jnp.int32)
            return

        conds = []
        if need_row_mask:
            conds.append(ib == pl.num_programs(0) - 1)
        if need_col_mask:
            conds.append(jt == pl.num_programs(1) - 1)
        is_edge = functools.reduce(lambda a, b: a | b, conds)

        @pl.when(jnp.logical_not(is_edge))
        def _interior():
            acc_ref[...] += match.astype(jnp.int32)

        @pl.when(is_edge)
        def _edge():
            valid = None
            if need_row_mask:
                rows = ib * blk_b + lax.broadcasted_iota(
                    jnp.int32, (blk_b, blk_t), 0)
                valid = rows < B
            if need_col_mask:
                cols = jt * blk_t + lax.broadcasted_iota(
                    jnp.int32, (blk_b, blk_t), 1)
                cmask = cols < T
                valid = cmask if valid is None else (valid & cmask)
            acc_ref[...] += (match & valid).astype(jnp.int32)

    return kernel


def _choose_blocks(B, T, itemsize, target_block_bytes):
    """Static tile selection (Python ints).

    Each block dim is either a multiple of (8, 128) or equals the full dim.
    """
    tgt_elems = max(8 * 128, target_block_bytes // itemsize)

    blk_b = B if B <= 8 else 8
    lane_budget = max(128, tgt_elems // blk_b)
    if T <= lane_budget:
        blk_t = T                      # full dim: always a legal block dim
        row_budget = max(1, tgt_elems // max(T, 1))
        if B > blk_b and row_budget > 8:
            blk_b = B if B <= row_budget else (row_budget // 8) * 8
    else:
        blk_t = (lane_budget // 128) * 128
    return blk_b, blk_t


def accuracy_vadsum(preds, targets, *, target_block_bytes=2 << 20):
    """preds, targets: [B, T] (any float/int dtype). Returns scalar f32 accuracy."""
    assert preds.shape == targets.shape and preds.ndim == 2
    B, T = preds.shape
    itemsize = max(jnp.dtype(preds.dtype).itemsize,
                   jnp.dtype(targets.dtype).itemsize)
    blk_b, blk_t = _choose_blocks(B, T, itemsize, target_block_bytes)
    grid = (pl.cdiv(B, blk_b), pl.cdiv(T, blk_t))

    partial = pl.pallas_call(
        _make_kernel(B, T, blk_b, blk_t),
        out_shape=jax.ShapeDtypeStruct((blk_b, blk_t), jnp.int32),
        grid=grid,
        in_specs=[
            pl.BlockSpec((blk_b, blk_t), lambda ib, jt: (ib, jt)),
            pl.BlockSpec((blk_b, blk_t), lambda ib, jt: (ib, jt)),
        ],
        # One VMEM-resident accumulator block shared by every grid step.
        out_specs=pl.BlockSpec((blk_b, blk_t), lambda ib, jt: (0, 0)),
        compiler_params=pltpu.CompilerParams(
            dimension_semantics=("arbitrary", "arbitrary"),
            vmem_limit_bytes=32 * 1024 * 1024,
        ),
    )(preds, targets)

    matches = jnp.sum(partial)                      # exact int32 match count
    return matches.astype(jnp.float32) / jnp.float32(B * T)


def _reference(preds, targets):
    """Pure-JAX mirror of the PyTorch metric (kept fully faithful)."""
    t = targets.astype(jnp.float32)
    t = jnp.where(t == 2.0, 1.0, t)
    p = jnp.where(preds.astype(jnp.float32) > 0.5, 1.0, 0.0)
    return jnp.mean((p == t).astype(jnp.float32))


if __name__ == "__main__":
    key = jax.random.PRNGKey(0)
    k1, k2, k3, k4, k5, k6 = jax.random.split(key, 6)

    # Case 1: small, module-consistent shapes [B, T] (single full block).
    B, T = 2, 16
    preds = jax.random.uniform(k1, (B, T), dtype=jnp.float32)           # probs
    targets = jax.random.randint(k2, (B, T), 0, 3).astype(jnp.float32)  # {0,1,2}
    acc = jax.block_until_ready(accuracy_vadsum(preds, targets))
    assert jnp.allclose(acc, _reference(preds, targets)), (acc,)

    # Case 2: bf16 wire dtype, tiled along T with a ragged (masked) last tile.
    # (Small blocks here are for correctness coverage only, not benchmarking.)
    B2, T2 = 4, 20_000
    preds2 = jax.random.uniform(k3, (B2, T2), dtype=jnp.bfloat16)
    targets2 = jax.random.randint(k4, (B2, T2), 0, 3).astype(jnp.bfloat16)
    acc2 = jax.block_until_ready(
        accuracy_vadsum(preds2, targets2, target_block_bytes=128 * 1024))
    assert jnp.allclose(acc2, _reference(preds2, targets2)), (acc2,)

    # Case 3: integer targets, tiled along B with a ragged (masked) last tile.
    B3, T3 = 20, 256
    preds3 = jax.random.uniform(k5, (B3, T3), dtype=jnp.float32)
    targets3 = jax.random.randint(k6, (B3, T3), 0, 3)                   # int32
    acc3 = jax.block_until_ready(
        accuracy_vadsum(preds3, targets3, target_block_bytes=8 * 1024))
    assert jnp.allclose(acc3, _reference(preds3, targets3)), (acc3,)

    print("KERNEL_OK")
</pallas_src>

<mosaic_0001>
module attributes {stable_mosaic.version = 11 : i64} {
  func.func @kernel(%arg0: i32, %arg1: i32, %arg2: memref<2x16xf32, #tpu.memory_space<vmem>>, %arg3: memref<2x16xf32, #tpu.memory_space<vmem>>, %arg4: memref<2x16xi32, #tpu.memory_space<vmem>>) attributes {dimension_semantics = [#tpu.dimension_semantics<arbitrary>, #tpu.dimension_semantics<arbitrary>], iteration_bounds = array<i64: 1, 1>, scalar_prefetch = 0 : i64, scratch_operands = 0 : i64, tpu.core_type = #tpu.core_type<tc>, window_params = [{transform_indices = @transform_0, window_bounds = array<i64: 2, 16>}, {transform_indices = @transform_1, window_bounds = array<i64: 2, 16>}, {pipeline_mode = #tpu.pipeline_mode<synchronous>, transform_indices = @transform_2, window_bounds = array<i64: 2, 16>}]} {
    %c0_i32 = arith.constant 0 : i32
    %0 = arith.cmpi eq, %arg0, %c0_i32 : i32
    %c0_i32_0 = arith.constant 0 : i32
    %1 = arith.cmpi eq, %arg1, %c0_i32_0 : i32
    %2 = arith.andi %0, %1 : i1
    %3 = arith.extui %2 : i1 to i32
    %c0_i32_1 = arith.constant 0 : i32
    %4 = arith.cmpi ne, %3, %c0_i32_1 : i32
    scf.if %4 {
      %c0_i32_11 = arith.constant 0 : i32
      %17 = vector.broadcast %c0_i32_11 : i32 to vector<2x16xi32>
      %c0_12 = arith.constant 0 : index
      %c0_13 = arith.constant 0 : index
      %18 = vector.load %arg4[%c0_12, %c0_13] : memref<2x16xi32, #tpu.memory_space<vmem>>, vector<2x16xi32>
      tpu.vector_store %arg4[%c0_12, %c0_13], %17 {strides = array<i32>} : memref<2x16xi32, #tpu.memory_space<vmem>>, vector<2x16xi32>,
    } else {
    }
    %c0 = arith.constant 0 : index
    %c0_2 = arith.constant 0 : index
    %5 = vector.load %arg2[%c0, %c0_2] : memref<2x16xf32, #tpu.memory_space<vmem>>, vector<2x16xf32>
    %cst = arith.constant 5.000000e-01 : f32
    %6 = vector.broadcast %cst : f32 to vector<2x16xf32>
    %7 = arith.cmpf ogt, %5, %6 : vector<2x16xf32>
    %c0_3 = arith.constant 0 : index
    %c0_4 = arith.constant 0 : index
    %8 = vector.load %arg3[%c0_3, %c0_4] : memref<2x16xf32, #tpu.memory_space<vmem>>, vector<2x16xf32>
    %cst_5 = arith.constant 5.000000e-01 : f32
    %9 = vector.broadcast %cst_5 : f32 to vector<2x16xf32>
    %10 = arith.cmpf ogt, %8, %9 : vector<2x16xf32>
    %11 = arith.xori %7, %10 : vector<2x16xi1>
    %cst_6 = arith.constant dense<true> : vector<2x16xi1>
    %12 = arith.xori %11, %cst_6 : vector<2x16xi1>
    %c0_7 = arith.constant 0 : index
    %c0_8 = arith.constant 0 : index
    %13 = vector.load %arg4[%c0_7, %c0_8] : memref<2x16xi32, #tpu.memory_space<vmem>>, vector<2x16xi32>
    %14 = arith.extui %12 : vector<2x16xi1> to vector<2x16xi32>
    %15 = arith.addi %13, %14 : vector<2x16xi32>
    %c0_9 = arith.constant 0 : index
    %c0_10 = arith.constant 0 : index
    %16 = vector.load %arg4[%c0_9, %c0_10] : memref<2x16xi32, #tpu.memory_space<vmem>>, vector<2x16xi32>
    tpu.vector_store %arg4[%c0_9, %c0_10], %15 {strides = array<i32>} : memref<2x16xi32, #tpu.memory_space<vmem>>, vector<2x16xi32>,
    return
  }
  func.func @transform_0(%arg0: i32, %arg1: i32) -> (i32, i32) {
    %c0_i32 = arith.constant 0 : i32
    return %arg0, %arg1 : i32, i32
  }
  func.func @transform_1(%arg0: i32, %arg1: i32) -> (i32, i32) {
    %c0_i32 = arith.constant 0 : i32
    return %arg0, %arg1 : i32, i32
  }
  func.func @transform_2(%arg0: i32, %arg1: i32) -> (i32, i32) {
    %c0_i32 = arith.constant 0 : i32
    %c0_i32_0 = arith.constant 0 : i32
    %c0_i32_1 = arith.constant 0 : i32
    return %c0_i32, %c0_i32_0 : i32, i32
  }
}

</mosaic_0001>

<llo_original>
// kernel: tpu_custom_call.1
$region0: #{tpu_custom_call.1}
  #allocation0 [shape = 'u32[]', space=smem, size = 0x4, offset = 0x4, fixed_abs, tag = 'smem constant byte address 0x4 - core index']
  #allocation1 [shape = 'u32[144,128]{1,0:T(1,128)}', space=vmem, size = 0x12000, scoped, tag = 'internal scratch']
  %s0 = inlined_call_operand.hbm [shape: f32[2,16], index: 0, kind: input, shape index: {}]
  %s1 = inlined_call_operand.vmem [shape: f32[2,16], index: 1, kind: input, shape index: {}]
  %s2 = inlined_call_operand.hbm [shape: s32[2,16], index: 2, kind: output, shape index: {}]
  %s3 = sld [smem:[#allocation0]]
  $region26: #{tpu_custom_call.1} parent=0
    _
  %s5 = ssub.s32 1, %s3
  %s6 = scalar_select 0, %s5, %s3
  $region1: #{tpu_custom_call.1} parent=0
    #allocation2 [shape = 'u8[1024]{0}', space=vmem, size = 0x400, scoped, tag = 'input window, operand 0, single buffered']
    #allocation3 [shape = 's32[1]{0}', space=sflag, size = 0x4, scoped, tag = 'scoped memory for tpu_custom_call.1']
    #allocation4 [shape = 's32[1]{0}', space=sflag, size = 0x4, scoped, tag = 'scoped memory for tpu_custom_call.1']
    #allocation5 [shape = 'u8[1024]{0}', space=vmem, size = 0x400, scoped, tag = 'output window, operand 0, single buffered']
    %7 = vsyncpa [#allocation3], 0
    %8 = vsyncpa [#allocation4], 0
    // Predicated region
    $region2: #{tpu_custom_call.1} parent=1 // pred_check
      _
    $region3: #{tpu_custom_call.1} parent=1 // pred_check_branch
      %10 = sbr.rel (0) target = $region5
    $region4: #{tpu_custom_call.1} parent=1 // pred_region
      %s12 = ssub.s32 32, 32
      %13 = vsyncadd [#allocation3], %s12
      %s15 = sshll.u32 [#allocation2], 4
      %s16 = int_to_ptr.vmem [resolvable:$true] %s15
      %18 = dma.hbm_to_vmem [thread:$0]  %s0, 32, %s16, [#allocation3]
    $region5: #{tpu_custom_call.1} parent=1 // pred_fallthru
      _
    // Predicated region
    $region6: #{tpu_custom_call.1} parent=1 // pred_check
      _
    $region7: #{tpu_custom_call.1} parent=1 // pred_check_branch
      %20 = sbr.rel (0) target = $region9
    $region8: #{tpu_custom_call.1} parent=1 // pred_region
      _
    $region9: #{tpu_custom_call.1} parent=1 // pred_fallthru
      _
    // Predicated region
    $region10: #{tpu_custom_call.1} parent=1 // pred_check
      _
    $region11: #{tpu_custom_call.1} parent=1 // pred_check_branch
      %22 = sbr.rel (0) target = $region13
    $region12: #{tpu_custom_call.1} parent=1 // pred_region
      %23 = dma.done [#allocation3], 32
    $region13: #{tpu_custom_call.1} parent=1 // pred_fallthru
      _
    %p24 = scmp.eq.s32.totalorder 0, 0
    %p25 = scmp.eq.s32.totalorder 0, 0
    %p26 = pnand %p24, %p25
    %p27 = pneg %p26
    // Predicated region
    $region14: #{tpu_custom_call.1} parent=1 // pred_check
      _
    $region15: #{tpu_custom_call.1} parent=1 // pred_check_branch
      %29 = sbr.rel (%p26) target = $region17
    $region16: #{tpu_custom_call.1} parent=1 // pred_region
      %vm30 = vcmask 123904
      %31 = vst.msk [vmem:[#allocation5] sm:$0x3] %vm30, 0
    $region17: #{tpu_custom_call.1} parent=1 // pred_fallthru
      _
    %v32 = vld [vmem:[#allocation2] sm:$0x3]
    %vm33 = vcmp.gt.f32.partialorder %v32, 0.5
    %v34 = vld [vmem:[%s1] sm:$0x3]
    %vm35 = vcmp.gt.f32.partialorder %v34, 0.5
    %vm36 = vmxor %vm33, %vm35
    %vm37 = vmxor %vm36, 1
    %v38 = vld [vmem:[#allocation5] sm:$0x3]
    %v39 = vsel %vm37, 1, 0
    %v40 = vadd.s32 %v38, %v39
    %vm41 = vcmask 123904
    %42 = vst.msk [vmem:[#allocation5] sm:$0x3] %vm41, %v40
    // Predicated region
    $region18: #{tpu_custom_call.1} parent=1 // pred_check
      _
    $region19: #{tpu_custom_call.1} parent=1 // pred_check_branch
      %44 = sbr.rel (0) target = $region21
    $region20: #{tpu_custom_call.1} parent=1 // pred_region
      %s46 = ssub.s32 32, 32
      %47 = vsyncadd [#allocation4], %s46
      %s49 = sshll.u32 [#allocation5], 4
      %s50 = int_to_ptr.vmem [resolvable:$true] %s49
      %52 = dma.vmem_to_hbm [thread:$0]  %s50, 32, %s2, [#allocation4]
    $region21: #{tpu_custom_call.1} parent=1 // pred_fallthru
      _
    // Predicated region
    $region22: #{tpu_custom_call.1} parent=1 // pred_check
      _
    $region23: #{tpu_custom_call.1} parent=1 // pred_check_branch
      %54 = sbr.rel (0) target = $region25
    $region24: #{tpu_custom_call.1} parent=1 // pred_region
      %55 = dma.done [#allocation4], 32
    $region25: #{tpu_custom_call.1} parent=1 // pred_fallthru
      _
    %56 = vsyncpa [#allocation3], 1
    %57 = vsyncpa [#allocation4], 1

</llo_original>
